<compile_context>
chip_gen: v7x
topology: tpu7x:2x2x1
jax: 0.10.0
libtpu: 0.0.40
codegen_flags: <defaults>
</compile_context>

<pallas_src>
import functools

import jax
import jax.numpy as jnp
from jax.experimental import pallas as pl
from jax.experimental.pallas import tpu as pltpu

EPS = 1e-8
ROW_TILE = 512                 # rows per grid step for the fused kernels
RGB_PAD = 8                    # lane padding for 3-channel RGB outputs
FACTORS = [1, 1, 1, 1, 1 / 2, 1 / 4, 1 / 8, 1 / 16, 1 / 32]


@functools.lru_cache(maxsize=None)
def _vmem_limit_bytes():
    # Never claim all of a chip's physical VMEM (v7x only has 64 MiB per TC).
    try:
        phys = int(pltpu.get_tpu_info().vmem_capacity_bytes)
    except Exception:
        return 32 * 1024 * 1024
    if phys >= 128 * 1024 * 1024:       # v5e / v6e
        return 64 * 1024 * 1024
    return min(32 * 1024 * 1024, phys // 2)


def _cparams(semantics):
    return pltpu.CompilerParams(dimension_semantics=semantics,
                                vmem_limit_bytes=_vmem_limit_bytes())


def _pick_tile(rows):
    """Row tile that divides `rows`, is sublane friendly, and exposes >=2 grid
    units (both v7x TensorCores) whenever that is cheap."""
    tile = min(ROW_TILE, rows)
    while rows % tile:
        tile //= 2
    if tile != rows and tile % 8:
        tile = rows                       # single full block fallback
    if rows // tile < 2 and rows % 16 == 0:
        tile = rows // 2                  # >=2 blocks, still a multiple of 8
    return tile


# ---------------------------------------------------------------------------
# Fused matmul kernel: (optional input PixelNorm) -> x@w + b -> LeakyReLU ->
# PixelNorm.  Used for the 1x1->4x4 ConvTranspose prologue and the RGB 1x1
# convs (weight-scale folded into w by the wrappers).
# ---------------------------------------------------------------------------
def _ws_matmul_kernel(x_ref, w_ref, b_ref, o_ref, *, prenorm, leaky, pixelnorm):
    x = x_ref[...]
    if prenorm:                                   # PixelNorm over the K axis
        xf = x.astype(jnp.float32)
        xf = xf * jax.lax.rsqrt(jnp.mean(xf * xf, axis=-1, keepdims=True) + EPS)
        xb = xf.astype(jnp.bfloat16)
    else:
        xb = x.astype(jnp.bfloat16)
    acc = jnp.dot(xb, w_ref[...], preferred_element_type=jnp.float32)
    acc = acc + b_ref[...]
    if leaky:
        acc = jnp.maximum(acc, 0.2 * acc)
    if pixelnorm:
        acc = acc * jax.lax.rsqrt(jnp.mean(acc * acc, axis=-1, keepdims=True) + EPS)
    o_ref[...] = acc.astype(o_ref.dtype)


def ws_matmul(x, w, b, *, prenorm=False, leaky=False, pixelnorm=False,
              out_dtype=jnp.bfloat16):
    """x: (rows, K), w: (K, C) (already weight-scaled), b: (C,)."""
    rows, K = x.shape
    K2, C = w.shape
    assert K == K2
    tile = _pick_tile(rows)
    return pl.pallas_call(
        functools.partial(_ws_matmul_kernel, prenorm=prenorm, leaky=leaky,
                          pixelnorm=pixelnorm),
        out_shape=jax.ShapeDtypeStruct((rows, C), out_dtype),
        grid=(rows // tile,),
        in_specs=[
            pl.BlockSpec((tile, K), lambda i: (i, 0)),
            pl.BlockSpec((K, C), lambda i: (0, 0)),
            pl.BlockSpec((1, C), lambda i: (0, 0)),
        ],
        out_specs=pl.BlockSpec((tile, C), lambda i: (i, 0)),
        compiler_params=_cparams(("parallel",)),
    )(x, w.astype(jnp.bfloat16), b.reshape(1, C).astype(jnp.float32))


# ---------------------------------------------------------------------------
# Fused WSConv2d 3x3 (pad=1) + bias + LeakyReLU + PixelNorm on UNPADDED
# flattened NHWC rows.  Per grid step the kernel DMAs one haloed row window
# (double-buffered, manual make_async_copy) and accumulates 9 shifted MXU
# matmuls; out-of-image taps are masked on the input slice so no zero-padded
# copy of the activation ever touches HBM.
# ---------------------------------------------------------------------------
def _conv3x3_kernel(x_hbm, w_ref, b_ref, o_ref, xbuf, sem, *, M, W, HW, tiles,
                    leaky, pixelnorm):
    n = pl.program_id(0)
    t = pl.program_id(1)
    HALO = W + 1
    L = M + 2 * HALO
    base = n * HW                               # image n's first flat row

    def dma(tile_idx, slot, action):
        """Start or wait the haloed-window DMA for `tile_idx` into `slot`."""
        def go(src_start, dst_start, length):
            cp = pltpu.make_async_copy(
                x_hbm.at[pl.ds(src_start, length), :],
                xbuf.at[slot, pl.ds(dst_start, length), :],
                sem.at[slot])
            (cp.start if action == "start" else cp.wait)()

        if tiles == 1:                          # whole image + garbage halo
            go(base, HALO, HW)
            return

        @pl.when(tile_idx == 0)                 # first tile: no front halo
        def _():
            go(base, HALO, M + HALO)

        @pl.when(tile_idx == tiles - 1)         # last tile: no back halo
        def _():
            go(base + HW - (M + HALO), 0, M + HALO)

        if tiles > 2:
            @pl.when(jnp.logical_and(tile_idx > 0, tile_idx < tiles - 1))
            def _():
                go(base + tile_idx * M - HALO, 0, L)

    slot = t % 2

    @pl.when(t == 0)                            # prime the pipeline per image
    def _():
        dma(t, slot, "start")

    if tiles > 1:                               # prefetch tile t+1
        @pl.when(t + 1 < tiles)
        def _():
            dma(t + 1, (t + 1) % 2, "start")

    dma(t, slot, "wait")                        # wait current slot only

    # Masks for out-of-image taps (also nullify the un-DMA'd halo garbage).
    m = t * M + jax.lax.broadcasted_iota(jnp.int32, (M, 1), 0)   # local row id
    col = jax.lax.rem(m, W)
    top_ok = m >= W
    bot_ok = m < HW - W
    left_ok = col != 0
    right_ok = col != W - 1

    cur = xbuf.at[slot]
    C_out = o_ref.shape[-1]
    acc = jnp.zeros((M, C_out), jnp.float32)
    for ky in range(3):
        for kx in range(3):
            xs = cur[pl.ds(ky * W + kx, M), :]
            mask = None
            if ky == 0:
                mask = top_ok
            elif ky == 2:
                mask = bot_ok
            if kx == 0:
                mask = left_ok if mask is None else jnp.logical_and(mask, left_ok)
            elif kx == 2:
                mask = right_ok if mask is None else jnp.logical_and(mask, right_ok)
            if mask is not None:
                xs = jnp.where(mask, xs, jnp.zeros_like(xs))
            acc = acc + jnp.dot(xs, w_ref[ky * 3 + kx],
                                preferred_element_type=jnp.float32)

    acc = acc + b_ref[...]
    if leaky:
        acc = jnp.maximum(acc, 0.2 * acc)
    if pixelnorm:
        acc = acc * jax.lax.rsqrt(jnp.mean(acc * acc, axis=-1, keepdims=True) + EPS)
    o_ref[...] = acc.astype(o_ref.dtype)


def ws_conv3x3(rows, N, H, W, w, b, *, leaky=True, pixelnorm=True):
    """rows: (N*H*W, C_in) bf16 flattened NHWC rows (unpadded).
    w: torch layout (C_out, C_in, 3, 3).  Returns (N*H*W, C_out) bf16."""
    HW = H * W
    C_in = rows.shape[-1]
    C_out = w.shape[0]
    scale = (2.0 / (C_in * 9)) ** 0.5                 # WS scale folded into w
    w9 = (jnp.transpose(w, (2, 3, 1, 0)).reshape(9, C_in, C_out)
          * scale).astype(jnp.bfloat16)
    b2 = b.reshape(1, C_out).astype(jnp.float32)

    M = min(ROW_TILE, HW)
    if HW > M:
        M = max(M, 2 * W)                             # halo fits in neighbours
    tiles = HW // M
    assert tiles * M == HW
    if tiles > 1:
        assert M + W + 1 <= HW and M >= W + 1
    L = M + 2 * (W + 1)

    return pl.pallas_call(
        functools.partial(_conv3x3_kernel, M=M, W=W, HW=HW, tiles=tiles,
                          leaky=leaky, pixelnorm=pixelnorm),
        out_shape=jax.ShapeDtypeStruct((N * HW, C_out), jnp.bfloat16),
        grid=(N, tiles),
        in_specs=[
            pl.BlockSpec(memory_space=pl.ANY),        # activation stays in HBM
            pl.BlockSpec((9, C_in, C_out), lambda n, t: (0, 0, 0)),
            pl.BlockSpec((1, C_out), lambda n, t: (0, 0)),
        ],
        out_specs=pl.BlockSpec((M, C_out), lambda n, t: (n * tiles + t, 0)),
        scratch_shapes=[
            pltpu.VMEM((2, L, C_in), jnp.bfloat16),   # double-buffered window
            pltpu.SemaphoreType.DMA((2,)),
        ],
        compiler_params=_cparams(("parallel", "arbitrary")),
    )(rows.astype(jnp.bfloat16), w9, b2)


# ---------------------------------------------------------------------------
# RGB 1x1 convs.  Outputs are padded only to 8 lanes (not 128) and the fade is
# fused with the generated-path conv; the skip path is computed at LOW
# resolution (1x1 conv commutes with nearest upsample).
# ---------------------------------------------------------------------------
def rgb_matmul(rows, p, factor=1.0):
    """WS 1x1 conv to RGB, optionally pre-multiplied by `factor` (alpha fold).
    Returns (rows, RGB_PAD) f32, padded lanes are exactly zero."""
    Cin = rows.shape[1]
    n_rgb = p["w"].shape[0]
    scale = (2.0 / Cin) ** 0.5 * factor
    wm = jnp.pad(p["w"].reshape(n_rgb, Cin).T * scale,
                 ((0, 0), (0, RGB_PAD - n_rgb)))
    bp = jnp.pad(p["b"] * factor, (0, RGB_PAD - n_rgb))
    return ws_matmul(rows, wm, bp, out_dtype=jnp.float32)


def _rgb_fade_kernel(gen_ref, skip_ref, wg_ref, b_ref, out_ref):
    acc = jnp.dot(gen_ref[...], wg_ref[...], preferred_element_type=jnp.float32)
    acc = acc + b_ref[...] + skip_ref[...]
    out_ref[...] = jnp.tanh(acc)


def rgb_fade(gen_rows, skip_up, p_gen, alpha):
    """tanh(alpha * rgb_gen(gen_rows) + skip_up), skip_up already (1-alpha)-scaled."""
    R, Cg = gen_rows.shape
    n_rgb = p_gen["w"].shape[0]
    scale = (2.0 / Cg) ** 0.5 * alpha
    wg = jnp.pad(p_gen["w"].reshape(n_rgb, Cg).T * scale,
                 ((0, 0), (0, RGB_PAD - n_rgb))).astype(jnp.bfloat16)
    bg = jnp.pad(p_gen["b"] * alpha,
                 (0, RGB_PAD - n_rgb)).reshape(1, RGB_PAD).astype(jnp.float32)

    tile = _pick_tile(R)
    out = pl.pallas_call(
        _rgb_fade_kernel,
        out_shape=jax.ShapeDtypeStruct((R, RGB_PAD), jnp.float32),
        grid=(R // tile,),
        in_specs=[
            pl.BlockSpec((tile, Cg), lambda i: (i, 0)),
            pl.BlockSpec((tile, RGB_PAD), lambda i: (i, 0)),
            pl.BlockSpec((Cg, RGB_PAD), lambda i: (0, 0)),
            pl.BlockSpec((1, RGB_PAD), lambda i: (0, 0)),
        ],
        out_specs=pl.BlockSpec((tile, RGB_PAD), lambda i: (i, 0)),
        compiler_params=_cparams(("parallel",)),
    )(gen_rows.astype(jnp.bfloat16), skip_up.astype(jnp.float32), wg, bg)
    return out[:, :n_rgb]


# ---------------------------------------------------------------------------
# Plain-JAX layout glue (no padded copies; only the upsample + final NCHW).
# ---------------------------------------------------------------------------
def upsample2x_rows(rows, N, H, W):
    # nearest-neighbour 2x upsample in the flattened NHWC rows layout.
    # TODO(synk): fold this replication into the conv kernel's halo DMA so the
    # 4x-sized upsampled tensor is never materialized in HBM.
    C = rows.shape[-1]
    x = rows.reshape(N, H, W, C)
    up = jnp.repeat(jnp.repeat(x, 2, axis=1), 2, axis=2)
    return up.reshape(N * 4 * H * W, C)


def rows_to_nchw(rows, N, H, W):
    C = rows.shape[-1]
    return jnp.transpose(rows.reshape(N, H, W, C), (0, 3, 1, 2))


# ---------------------------------------------------------------------------
# Generator forward
# ---------------------------------------------------------------------------
def generator_forward(params, x, alpha, steps):
    N, Z = x.shape[0], x.shape[1]
    p0 = params["initial"]
    C0 = p0["ct_w"].shape[1]
    n_rgb = params["rgb"][0]["w"].shape[0]

    # initial: PixelNorm -> ConvTranspose2d(Z, C0, 4, 1, 0) -> LeakyReLU fused
    # into one matmul kernel; then WSConv3x3 + LeakyReLU + PixelNorm.
    z = x.reshape(N, Z)
    w_ct = jnp.transpose(p0["ct_w"], (0, 2, 3, 1)).reshape(Z, 16 * C0)
    b_ct = jnp.tile(p0["ct_b"], 16)
    rows = ws_matmul(z, w_ct, b_ct, prenorm=True, leaky=True)      # (N, 16*C0)
    rows = rows.reshape(N * 16, C0)                                # 4x4 rows
    H = W = 4
    rows = ws_conv3x3(rows, N, H, W, p0["conv_w"], p0["conv_b"])

    if steps == 0:
        # torch: return self.initial_rgb(out)  (no tanh on this path)
        out = rgb_matmul(rows, params["rgb"][0])[:, :n_rgb]
        return rows_to_nchw(out, N, H, W)

    prev_rows, prev_H, prev_W = rows, H, W
    for step in range(steps):
        prev_rows, prev_H, prev_W = rows, H, W
        rows = upsample2x_rows(rows, N, H, W)
        H, W = 2 * H, 2 * W
        bp = params["prog"][step]
        rows = ws_conv3x3(rows, N, H, W, bp["c1_w"], bp["c1_b"])
        rows = ws_conv3x3(rows, N, H, W, bp["c2_w"], bp["c2_b"])

    # RGB skip branch: 1x1 conv commutes with nearest upsample, so compute it
    # at the LOW resolution (alpha-fold applied) and upsample only 8 channels.
    skip_low = rgb_matmul(prev_rows, params["rgb"][steps - 1], factor=1.0 - alpha)
    skip_up = upsample2x_rows(skip_low, N, prev_H, prev_W)         # (N*H*W, 8)
    out = rgb_fade(rows, skip_up, params["rgb"][steps], alpha)
    return rows_to_nchw(out, N, H, W)


# ---------------------------------------------------------------------------
# Deterministic parameter init (shapes follow Generator.__init__)
# ---------------------------------------------------------------------------
def init_params(key, z_dim, in_channels, img_channels=3):
    keys = iter(jax.random.split(key, 64))
    nrm = lambda shape: jax.random.normal(next(keys), shape, dtype=jnp.float32)

    params = {
        "initial": {
            "ct_w": nrm((z_dim, in_channels, 4, 4)) * 0.1,   # ConvTranspose2d
            "ct_b": jnp.zeros((in_channels,), jnp.float32),
            "conv_w": nrm((in_channels, in_channels, 3, 3)),  # WSConv2d: N(0,1)
            "conv_b": jnp.zeros((in_channels,), jnp.float32),
        },
        "prog": [],
        "rgb": [{"w": nrm((img_channels, in_channels, 1, 1)),
                 "b": jnp.zeros((img_channels,), jnp.float32)}],
    }
    for i in range(len(FACTORS) - 1):
        cin = int(in_channels * FACTORS[i])
        cout = int(in_channels * FACTORS[i + 1])
        params["prog"].append({
            "c1_w": nrm((cout, cin, 3, 3)), "c1_b": jnp.zeros((cout,), jnp.float32),
            "c2_w": nrm((cout, cout, 3, 3)), "c2_b": jnp.zeros((cout,), jnp.float32),
        })
        params["rgb"].append({"w": nrm((img_channels, cout, 1, 1)),
                              "b": jnp.zeros((img_channels,), jnp.float32)})
    return params


# ---------------------------------------------------------------------------
if __name__ == "__main__":
    Z_DIM, IN_CH, IMG_CH = 32, 32, 3
    N, STEPS, ALPHA = 2, 2, 0.5

    key = jax.random.PRNGKey(0)
    pkey, xkey = jax.random.split(key)
    params = init_params(pkey, Z_DIM, IN_CH, IMG_CH)
    x = jax.random.normal(xkey, (N, Z_DIM, 1, 1), dtype=jnp.float32)

    out = generator_forward(params, x, ALPHA, STEPS)
    out = jax.block_until_ready(out)
    assert out.shape == (N, IMG_CH, 4 * (2 ** STEPS), 4 * (2 ** STEPS)), out.shape
    assert bool(jnp.all(jnp.isfinite(out)))
    print("KERNEL_OK")
</pallas_src>

<mosaic_0001>
module attributes {stable_mosaic.version = 11 : i64} {
  func.func @_ws_matmul_kernel(%arg0: i32, %arg1: memref<2x32xf32, #tpu.memory_space<vmem>>, %arg2: memref<32x512xbf16, #tpu.memory_space<vmem>>, %arg3: memref<1x512xf32, #tpu.memory_space<vmem>>, %arg4: memref<2x512xbf16, #tpu.memory_space<vmem>>) attributes {dimension_semantics = [#tpu.dimension_semantics<parallel>], iteration_bounds = array<i64: 1>, scalar_prefetch = 0 : i64, scratch_operands = 0 : i64, tpu.core_type = #tpu.core_type<tc>, window_params = [{transform_indices = @transform_0, window_bounds = array<i64: 2, 32>}, {pipeline_mode = #tpu.pipeline_mode<synchronous>, transform_indices = @transform_1, window_bounds = array<i64: 32, 512>}, {pipeline_mode = #tpu.pipeline_mode<synchronous>, transform_indices = @transform_2, window_bounds = array<i64: 1, 512>}, {transform_indices = @transform_3, window_bounds = array<i64: 2, 512>}]} {
    %c0 = arith.constant 0 : index
    %c0_0 = arith.constant 0 : index
    %0 = vector.load %arg1[%c0, %c0_0] : memref<2x32xf32, #tpu.memory_space<vmem>>, vector<2x32xf32>
    %1 = arith.mulf %0, %0 : vector<2x32xf32>
    %cst = arith.constant dense<0.000000e+00> : vector<2xf32>
    %2 = vector.multi_reduction <add>, %1, %cst [1] : vector<2x32xf32> to vector<2xf32>
    %3 = vector.shape_cast %2 : vector<2xf32> to vector<2x1xf32>
    %cst_1 = arith.constant 3.200000e+01 : f32
    %4 = vector.broadcast %cst_1 : f32 to vector<2x1xf32>
    %5 = arith.divf %3, %4 : vector<2x1xf32>
    %cst_2 = arith.constant 9.99999993E-9 : f32
    %6 = vector.broadcast %cst_2 : f32 to vector<2x1xf32>
    %7 = arith.addf %5, %6 : vector<2x1xf32>
    %8 = math.rsqrt %7 : vector<2x1xf32>
    %9 = vector.broadcast %8 : vector<2x1xf32> to vector<2x32xf32>
    %10 = arith.mulf %0, %9 : vector<2x32xf32>
    %11 = arith.truncf %10 : vector<2x32xf32> to vector<2x32xbf16>
    %c0_3 = arith.constant 0 : index
    %c0_4 = arith.constant 0 : index
    %12 = vector.load %arg2[%c0_3, %c0_4] : memref<32x512xbf16, #tpu.memory_space<vmem>>, vector<32x512xbf16>
    %cst_5 = arith.constant dense<0.000000e+00> : vector<2x512xf32>
    %13 = tpu.matmul %11, %12, %cst_5 {dimension_numbers = #tpu.dot_dimension_numbers<[1], [0], [0], [1], [0, 0, 1, 1], [], []>} : vector<2x32xbf16>, vector<32x512xbf16>, vector<2x512xf32> -> vector<2x512xf32>
    %c0_6 = arith.constant 0 : index
    %c0_7 = arith.constant 0 : index
    %14 = vector.load %arg3[%c0_6, %c0_7] : memref<1x512xf32, #tpu.memory_space<vmem>>, vector<1x512xf32>
    %15 = vector.broadcast %14 : vector<1x512xf32> to vector<2x512xf32>
    %16 = arith.addf %13, %15 : vector<2x512xf32>
    %cst_8 = arith.constant 2.000000e-01 : f32
    %17 = vector.broadcast %cst_8 : f32 to vector<2x512xf32>
    %18 = arith.mulf %17, %16 : vector<2x512xf32>
    %19 = arith.maximumf %16, %18 : vector<2x512xf32>
    %20 = arith.truncf %19 : vector<2x512xf32> to vector<2x512xbf16>
    %c0_9 = arith.constant 0 : index
    %c0_10 = arith.constant 0 : index
    %21 = vector.load %arg4[%c0_9, %c0_10] : memref<2x512xbf16, #tpu.memory_space<vmem>>, vector<2x512xbf16>
    tpu.vector_store %arg4[%c0_9, %c0_10], %20 {strides = array<i32>} : memref<2x512xbf16, #tpu.memory_space<vmem>>, vector<2x512xbf16>,
    return
  }
  func.func @transform_0(%arg0: i32) -> (i32, i32) {
    %c0_i32 = arith.constant 0 : i32
    %c0_i32_0 = arith.constant 0 : i32
    return %arg0, %c0_i32 : i32, i32
  }
  func.func @transform_1(%arg0: i32) -> (i32, i32) {
    %c0_i32 = arith.constant 0 : i32
    %c0_i32_0 = arith.constant 0 : i32
    %c0_i32_1 = arith.constant 0 : i32
    return %c0_i32, %c0_i32_0 : i32, i32
  }
  func.func @transform_2(%arg0: i32) -> (i32, i32) {
    %c0_i32 = arith.constant 0 : i32
    %c0_i32_0 = arith.constant 0 : i32
    %c0_i32_1 = arith.constant 0 : i32
    return %c0_i32, %c0_i32_0 : i32, i32
  }
  func.func @transform_3(%arg0: i32) -> (i32, i32) {
    %c0_i32 = arith.constant 0 : i32
    %c0_i32_0 = arith.constant 0 : i32
    return %arg0, %c0_i32 : i32, i32
  }
}

</mosaic_0001>

<llo_original>
// kernel: tpu_custom_call.1
$region0: #{tpu_custom_call.1}
  #allocation0 [shape = 'u32[]', space=smem, size = 0x4, offset = 0x4, fixed_abs, tag = 'smem constant byte address 0x4 - core index']
  #allocation1 [shape = 'u32[144,128]{1,0:T(1,128)}', space=vmem, size = 0x12000, scoped, tag = 'internal scratch']
  %s0 = inlined_call_operand.hbm [shape: f32[2,32], index: 0, kind: input, shape index: {}]
  %s1 = inlined_call_operand.hbm [shape: bf16[32,512], index: 1, kind: input, shape index: {}]
  %s2 = inlined_call_operand.vmem [shape: f32[1,512], index: 2, kind: input, shape index: {}]
  %s3 = inlined_call_operand.hbm [shape: bf16[2,512], index: 3, kind: output, shape index: {}]
  %s4 = sld [smem:[#allocation0]]
  $region30: #{tpu_custom_call.1} parent=0
    _
  %s6 = ssub.s32 1, %s4
  %s7 = scalar_select 0, %s6, %s4
  $region1: #{tpu_custom_call.1} parent=0
    #allocation2 [shape = 'u8[1024]{0}', space=vmem, size = 0x400, scoped, tag = 'input window, operand 0, single buffered']
    #allocation3 [shape = 's32[1]{0}', space=sflag, size = 0x4, scoped, tag = 'scoped memory for tpu_custom_call.1']
    #allocation4 [shape = 's32[1]{0}', space=sflag, size = 0x4, scoped, tag = 'scoped memory for tpu_custom_call.1']
    #allocation5 [shape = 'u8[32768]{0}', space=vmem, size = 0x8000, scoped, tag = 'input window, operand 1, single buffered']
    #allocation6 [shape = 's32[1]{0}', space=sflag, size = 0x4, scoped, tag = 'scoped memory for tpu_custom_call.1']
    #allocation7 [shape = 'u8[2048]{0}', space=vmem, size = 0x800, scoped, tag = 'output window, operand 0, single buffered']
    %8 = vsyncpa [#allocation3], 0
    %9 = vsyncpa [#allocation6], 0
    %10 = vsyncpa [#allocation4], 0
    // Predicated region
    $region2: #{tpu_custom_call.1} parent=1 // pred_check
      _
    $region3: #{tpu_custom_call.1} parent=1 // pred_check_branch
      %12 = sbr.rel (0) target = $region5
    $region4: #{tpu_custom_call.1} parent=1 // pred_region
      %s14 = ssub.s32 32, 32
      %15 = vsyncadd [#allocation3], %s14
      %s17 = sshll.u32 [#allocation2], 4
      %s18 = int_to_ptr.vmem [resolvable:$true] %s17
      %20 = dma.hbm_to_vmem [thread:$0]  %s0, 32, %s18, [#allocation3]
    $region5: #{tpu_custom_call.1} parent=1 // pred_fallthru
      _
    // Predicated region
    $region6: #{tpu_custom_call.1} parent=1 // pred_check
      _
    $region7: #{tpu_custom_call.1} parent=1 // pred_check_branch
      %22 = sbr.rel (0) target = $region9
    $region8: #{tpu_custom_call.1} parent=1 // pred_region
      %s24 = ssub.s32 1024, 1024
      %25 = vsyncadd [#allocation6], %s24
      %s26 = sshll.u32 [#allocation5], 4
      %s27 = int_to_ptr.vmem [resolvable:$true] %s26
      %32 = dma.hbm_to_vmem [thread:$0]  %s1, 1024, %s27, [#allocation6], 256, 256, 16
    $region9: #{tpu_custom_call.1} parent=1 // pred_fallthru
      _
    // Predicated region
    $region10: #{tpu_custom_call.1} parent=1 // pred_check
      _
    $region11: #{tpu_custom_call.1} parent=1 // pred_check_branch
      %34 = sbr.rel (0) target = $region13
    $region12: #{tpu_custom_call.1} parent=1 // pred_region
      _
    $region13: #{tpu_custom_call.1} parent=1 // pred_fallthru
      _
    // Predicated region
    $region14: #{tpu_custom_call.1} parent=1 // pred_check
      _
    $region15: #{tpu_custom_call.1} parent=1 // pred_check_branch
      %36 = sbr.rel (0) target = $region17
    $region16: #{tpu_custom_call.1} parent=1 // pred_region
      %37 = dma.done [#allocation3], 32
    $region17: #{tpu_custom_call.1} parent=1 // pred_fallthru
      _
    // Predicated region
    $region18: #{tpu_custom_call.1} parent=1 // pred_check
      _
    $region19: #{tpu_custom_call.1} parent=1 // pred_check_branch
      %39 = sbr.rel (0) target = $region21
    $region20: #{tpu_custom_call.1} parent=1 // pred_region
      %40 = dma.done [#allocation6], 1024
    $region21: #{tpu_custom_call.1} parent=1 // pred_fallthru
      _
    %v42 = vld [vmem:[#allocation2] sm:$0x3]
    %v43 = vmul.f32 %v42, %v42
    %vm44 = vcmask 254976
    %v45 = vsel %vm44, %v43, 0.0
    %46 = vadd.xlane.f32.xlu0 %v45
    %v47 = vpop.xlane.xlu0 %46
    %v48 = vrcp.pop 32.0
    %v49 = vmul.f32 %v47, %v48
    %v50 = vadd.f32 %v49, 1e-08
    %v51 = vrsqrt.pop %v50
    %v52 = vmul.f32 %v42, %v51
    %v53 = vpack.c.bf16 %v52, %v52
    %v54 = vld [vmem:[#allocation5] sm:$0xff]
    %v55 = vld [vmem:[#allocation5 + $0x8] sm:$0xff]
    %v56 = vld [vmem:[#allocation5 + $0x10] sm:$0xff]
    %v57 = vld [vmem:[#allocation5 + $0x18] sm:$0xff]
    %v58 = vld [vmem:[#allocation5 + $0x20] sm:$0xff]
    %v59 = vld [vmem:[#allocation5 + $0x28] sm:$0xff]
    %v60 = vld [vmem:[#allocation5 + $0x30] sm:$0xff]
    %v61 = vld [vmem:[#allocation5 + $0x38] sm:$0xff]
    %v62 = vld [vmem:[%s2] sm:$0xf]
    %v64 = vlaneseq
    %v65 = vshrl.u32 %v64, 7
    %v66 = vsub.s32 0, %v65
    %v67 = vrot.slane %v62, %v66
    %v68 = vlaneseq
    %v69 = vshrl.u32 %v68, 7
    %v70 = vsub.s32 1, %v69
    %v71 = vrot.slane %v62, %v70
    %v72 = vlaneseq
    %v73 = vshrl.u32 %v72, 7
    %v74 = vsub.s32 2, %v73
    %v75 = vrot.slane %v62, %v74
    %v76 = vlaneseq
    %v77 = vshrl.u32 %v76, 7
    %v78 = vsub.s32 3, %v77
    %v79 = vrot.slane %v62, %v78
    %v92 = vunpack.c.l.b16 %v54
    %v93 = vunpack.c.h.b16 %v54
    %v94 = vunpack.c.l.b16 %v55
    %v95 = vunpack.c.h.b16 %v55
    %v96 = vunpack.c.l.b16 %v56
    %v97 = vunpack.c.h.b16 %v56
    %v98 = vunpack.c.l.b16 %v57
    %v99 = vunpack.c.h.b16 %v57
    %v100 = vunpack.c.l.b16 %v58
    %v101 = vunpack.c.h.b16 %v58
    %v102 = vunpack.c.l.b16 %v59
    %v103 = vunpack.c.h.b16 %v59
    %v104 = vunpack.c.l.b16 %v60
    %v105 = vunpack.c.h.b16 %v60
    %v106 = vunpack.c.l.b16 %v61
    %v107 = vunpack.c.h.b16 %v61
    %v108 = vpack.c.b16 %v96, %v92
    %v109 = vpack.c.b16 %v97, %v93
    %v110 = vpack.c.b16 %v98, %v94
    %v111 = vpack.c.b16 %v99, %v95
    %v112 = vpack.c.b16 %v104, %v100
    %v113 = vpack.c.b16 %v105, %v101
    %v114 = vpack.c.b16 %v106, %v102
    %v115 = vpack.c.b16 %v107, %v103
    %vm124 = vcmask 261120
    %v126 = vsel %vm124, %v53, 0
    %128 = vmatprep.subr.bf16.mxu0 %v109
    %129 = vmatpush1.bf16.msra.mxu0 %v108
    %130 = vmatprep.subr.bf16.mxu0 %v113
    %131 = vmatpush1.bf16.msra.mxu0 %v112
    %132 = vmatprep.subr.bf16.mxu0 0
    %133 = vmatpush1.bf16.msra.mxu0 0
    %134 = vmatprep.subr.bf16.mxu0 0
    %135 = vmatpush1.bf16.msra.mxu0 0
    %136 = vmatprep.subr.bf16.mxu0 0
    %137 = vmatpush1.bf16.msra.mxu0 0
    %138 = vmatprep.subr.bf16.mxu0 0
    %139 = vmatpush1.bf16.msra.mxu0 0
    %140 = vmatprep.subr.bf16.mxu0 0
    %141 = vmatpush1.bf16.msra.mxu0 0
    %142 = vmatprep.subr.bf16.mxu0 0
    %143 = vmatpush1.bf16.msra.mxu0 0
    %144 = vmatprep.subr.bf16.mxu0 0
    %145 = vmatpush1.bf16.msra.mxu0 0
    %146 = vmatprep.subr.bf16.mxu0 0
    %147 = vmatpush1.bf16.msra.mxu0 0
    %148 = vmatprep.subr.bf16.mxu0 0
    %149 = vmatpush1.bf16.msra.mxu0 0
    %150 = vmatprep.subr.bf16.mxu0 0
    %151 = vmatpush1.bf16.msra.mxu0 0
    %152 = vmatprep.subr.bf16.mxu0 0
    %153 = vmatpush1.bf16.msra.mxu0 0
    %154 = vmatprep.subr.bf16.mxu0 0
    %155 = vmatpush1.bf16.msra.mxu0 0
    %156 = vmatprep.subr.bf16.mxu0 0
    %157 = vmatpush1.bf16.msra.mxu0 0
    %158 = vmatprep.subr.bf16.mxu0 0
    %159 = vmatpush1.bf16.msra.mxu0 0
    %160 = vmatprep.mubr.bf16.mxu0 0
    %161 = vmatmul.mubr.bf16.gmra.mrb[0].mxu0 %v126
    %v162 = vpop.f32.mrb[0].mxu0
    %v163 = vadd.f32 %v67, %v162
    %v164 = vpop.f32.mrb[0].mxu0
    %v165 = vadd.f32 %v71, %v164
    %v166 = vpop.f32.mrb[0].mxu0
    %v167 = vpop.f32.mrb[0].mxu0
    %168 = vdwg.mxu0
    %169 = vmatprep.subr.bf16.mxu0 %v111
    %170 = vmatpush1.bf16.msra.mxu0 %v110
    %171 = vmatprep.subr.bf16.mxu0 %v115
    %172 = vmatpush1.bf16.msra.mxu0 %v114
    %173 = vmatprep.subr.bf16.mxu0 0
    %174 = vmatpush1.bf16.msra.mxu0 0
    %175 = vmatprep.subr.bf16.mxu0 0
    %176 = vmatpush1.bf16.msra.mxu0 0
    %177 = vmatprep.subr.bf16.mxu0 0
    %178 = vmatpush1.bf16.msra.mxu0 0
    %179 = vmatprep.subr.bf16.mxu0 0
    %180 = vmatpush1.bf16.msra.mxu0 0
    %181 = vmatprep.subr.bf16.mxu0 0
    %182 = vmatpush1.bf16.msra.mxu0 0
    %183 = vmatprep.subr.bf16.mxu0 0
    %184 = vmatpush1.bf16.msra.mxu0 0
    %185 = vmatprep.subr.bf16.mxu0 0
    %186 = vmatpush1.bf16.msra.mxu0 0
    %187 = vmatprep.subr.bf16.mxu0 0
    %188 = vmatpush1.bf16.msra.mxu0 0
    %189 = vmatprep.subr.bf16.mxu0 0
    %190 = vmatpush1.bf16.msra.mxu0 0
    %191 = vmatprep.subr.bf16.mxu0 0
    %192 = vmatpush1.bf16.msra.mxu0 0
    %193 = vmatprep.subr.bf16.mxu0 0
    %194 = vmatpush1.bf16.msra.mxu0 0
    %195 = vmatprep.subr.bf16.mxu0 0
    %196 = vmatpush1.bf16.msra.mxu0 0
    %197 = vmatprep.subr.bf16.mxu0 0
    %198 = vmatpush1.bf16.msra.mxu0 0
    %199 = vmatprep.subr.bf16.mxu0 0
    %200 = vmatpush1.bf16.msra.mxu0 0
    %201 = vmatprep.mubr.bf16.mxu0 0
    %202 = vmatmul.mubr.bf16.gmra.mrb[0].mxu0 %v126
    %v203 = vpop.f32.mrb[0].mxu0
    %v204 = vadd.f32 %v75, %v203
    %v205 = vpop.f32.mrb[0].mxu0
    %v206 = vadd.f32 %v79, %v205
    %v207 = vpop.f32.mrb[0].mxu0
    %v208 = vpop.f32.mrb[0].mxu0
    %209 = vdwg.mxu0
    %v210 = vmul.f32 %v163, 0.2
    %v211 = vmul.f32 %v165, 0.2
    %v212 = vmul.f32 %v204, 0.2
    %v213 = vmul.f32 %v206, 0.2
    %v214 = vmax.f32 %v163, %v210
    %v215 = vmax.f32 %v165, %v211
    %v216 = vmax.f32 %v204, %v212
    %v217 = vmax.f32 %v206, %v213
    %v218 = vpack.c.bf16 %v214, %v214
    %v219 = vpack.c.bf16 %v215, %v215
    %v220 = vpack.c.bf16 %v216, %v216
    %v221 = vpack.c.bf16 %v217, %v217
    %v226 = vcombine.low %v218, %v219
    %v227 = vcombine.low %v220, %v221
    %v229 = vunpack.c.l.s4 1966171168
    %v230 = vunpack.c.0.s8 %v229
    %v231 = vlaneseq
    %v232 = vshrl.u32 %v231, 7
    %v233 = vsub.s32 %v230, %v232
    %v234 = vrot.slane %v226, %v233
    %v236 = vunpack.c.l.s4 1966171168
    %v237 = vunpack.c.0.s8 %v236
    %v238 = vlaneseq
    %v239 = vshrl.u32 %v238, 7
    %v240 = vsub.s32 %v237, %v239
    %v241 = vrot.slane %v227, %v240
    %v242 = vcombine.low %v234, %v241
    %v244 = vunpack.c.l.s4 1966171168
    %v245 = vunpack.c.0.s8 %v244
    %v246 = vlaneseq
    %v247 = vshrl.u32 %v246, 7
    %v248 = vsub.s32 %v245, %v247
    %v249 = vrot.slane %v242, %v248
    %251 = vst [vmem:[#allocation7] sm:$0xf] %v249
    // Predicated region
    $region22: #{tpu_custom_call.1} parent=1 // pred_check
      _
    $region23: #{tpu_custom_call.1} parent=1 // pred_check_branch
      %253 = sbr.rel (0) target = $region25
    $region24: #{tpu_custom_call.1} parent=1 // pred_region
      %s255 = ssub.s32 64, 64
      %256 = vsyncadd [#allocation4], %s255
      %s258 = sshll.u32 [#allocation7], 4
      %s259 = int_to_ptr.vmem [resolvable:$true] %s258
      %261 = dma.vmem_to_hbm [thread:$0]  %s259, 64, %s3, [#allocation4]
    $region25: #{tpu_custom_call.1} parent=1 // pred_fallthru
      _
    // Predicated region
    $region26: #{tpu_custom_call.1} parent=1 // pred_check
      _
    $region27: #{tpu_custom_call.1} parent=1 // pred_check_branch
      %263 = sbr.rel (0) target = $region29
    $region28: #{tpu_custom_call.1} parent=1 // pred_region
      %264 = dma.done [#allocation4], 64
    $region29: #{tpu_custom_call.1} parent=1 // pred_fallthru
      _
    %265 = vsyncpa [#allocation3], 1
    %266 = vsyncpa [#allocation6], 1
    %267 = vsyncpa [#allocation4], 1

</llo_original>
